<compile_context>
chip_gen: v7x
topology: tpu7x:2x2x1
jax: 0.10.0
libtpu: 0.0.40
codegen_flags: <defaults>
</compile_context>

<pallas_src>
import functools

import numpy as np
import jax
import jax.numpy as jnp
from jax.experimental import pallas as pl
from jax.experimental.pallas import tpu as pltpu


# ----------------------------- Pallas kernel -----------------------------

def _fe_kernel(x_ref, sel_ref, wc_ref, b1_ref, w3_ref, o_ref):
    """Fused FeatureExtractor forward for a block of TB graphs.

    x_ref:   (TB, N*N*C)   lane-dense flattened input block
    sel_ref: (N*N*C, 2C)   per-channel [diag-selector | ones] reduction matrix
    wc_ref:  (2C, HF)      pre-combined lin1/lin2 weight (scales folded in)
    b1_ref:  (1, HF)       lin1 bias
    w3_ref:  (HF, HF)      lin3 weight
    o_ref:   (TB, HF)
    """
    # One MXU matmul produces [trace_sum | total_sum] per channel for TB graphs.
    tt = jnp.dot(x_ref[...], sel_ref[...], preferred_element_type=jnp.float32)
    # Folded lin1 + lin2 (+ bias), then residual lin3(relu(.)).
    out = jnp.dot(tt, wc_ref[...], preferred_element_type=jnp.float32) + b1_ref[...]
    out = out + jnp.dot(jnp.maximum(out, 0.0), w3_ref[...],
                        preferred_element_type=jnp.float32)
    o_ref[...] = out


# ----------------------------- helpers -----------------------------

@functools.lru_cache(maxsize=None)
def _selector_np(n, c):
    """(N*N*C, 2C) matrix: cols [0:C] pick the diagonal (trace) per channel,
    cols [C:2C] sum everything (total) per channel.  Row-major flat index
    k = (i*N + j)*C + ch matches u.reshape(B, N*N*C)."""
    nnc = n * n * c
    sel = np.zeros((nnc, 2 * c), dtype=np.float32)
    k = np.arange(nnc)
    ch = k % c
    ij = k // c
    i, j = ij // n, ij % n
    sel[k, c + ch] = 1.0                       # total
    diag = i == j
    sel[k[diag], ch[diag]] = 1.0               # trace
    return sel


def _choose_tb(b_pad8, nnc, itemsize, vmem_budget_bytes=16 << 20):
    """Largest MXU-friendly TB whose double-buffered u tile fits the budget
    (budget chosen to be safe even on v7x's 64 MiB VMEM)."""
    tb = 8
    for cand in (256, 128, 64, 32, 16, 8):
        if cand <= b_pad8 and 2 * cand * nnc * itemsize <= vmem_budget_bytes:
            tb = cand
            break
    # v7x megacore: prefer >= 2 grid steps when the batch allows it.
    while tb > 8 and pl.cdiv(b_pad8, tb) < 2:
        tb //= 2
    return tb


# ----------------------------- wrapper -----------------------------

def feature_extractor_forward(u, params, aggr='add', graph_class=True):
    """u: (B, N, N, C) -> (B, HF).  Single fused pallas_call, batched over B."""
    if not graph_class:
        # TODO(synk): graph_class=False (per-node readout) branch not implemented.
        raise NotImplementedError("graph_class=False not implemented")
    B, N, N2, C = u.shape
    assert N == N2 and N >= 2
    HF = params['w1'].shape[1]
    NNC = N * N * C

    # aggr folded into static scale constants.
    if aggr == 'add':
        lin1_scale = 1.0 / N               # lin1 input = trace_sum / n
        total_c, trace_c = 1.0, 1.0
    elif aggr == 'mean':
        lin1_scale = 1.0 / (N * N)         # (trace_sum / n) / n
        total_c, trace_c = 1.0 / (N * N), 1.0 / N
    else:
        # TODO(synk): aggr='max' not implemented (non-linear reduction).
        raise NotImplementedError(f"aggr={aggr!r} not implemented")
    inv_off = 1.0 / (N * (N - 1))

    # Fold lin1/lin2 (and all scaling) into one (2C, HF) weight:
    #   out1+out2 = trace_sum @ (lin1_scale*w1 - trace_c*inv_off*w2)
    #             + total_sum @ (total_c*inv_off*w2) + b1
    w1, b1, w2, w3 = params['w1'], params['b1'], params['w2'], params['w3']
    w_tr = lin1_scale * w1 - (trace_c * inv_off) * w2
    w_tot = (total_c * inv_off) * w2
    wc = jnp.concatenate([w_tr, w_tot], axis=0)              # (2C, HF)

    # Lane-dense flatten (free, row-major): (B, N, N, C) -> (B, N*N*C).
    x = u.reshape(B, NNC)
    sel = jnp.asarray(_selector_np(N, C), dtype=x.dtype)     # cached constant

    itemsize = np.dtype(x.dtype).itemsize
    b_pad8 = ((B + 7) // 8) * 8
    TB = _choose_tb(b_pad8, NNC, itemsize)
    grid = pl.cdiv(B, TB)
    B_pad = grid * TB
    if B_pad != B:
        x = jnp.pad(x, ((0, B_pad - B), (0, 0)))

    flops = 2 * B_pad * (NNC * 2 * C + 2 * C * HF + HF * HF)
    bytes_accessed = (B_pad * NNC + NNC * 2 * C + 2 * C * HF + HF + HF * HF) * itemsize \
                     + B_pad * HF * 4

    out = pl.pallas_call(
        _fe_kernel,
        out_shape=jax.ShapeDtypeStruct((B_pad, HF), jnp.float32),
        grid=(grid,),
        in_specs=[
            pl.BlockSpec((TB, NNC), lambda b: (b, 0)),        # this block's graphs
            pl.BlockSpec((NNC, 2 * C), lambda b: (0, 0)),      # reduction selector
            pl.BlockSpec((2 * C, HF), lambda b: (0, 0)),       # combined lin1/lin2
            pl.BlockSpec((1, HF), lambda b: (0, 0)),           # lin1 bias
            pl.BlockSpec((HF, HF), lambda b: (0, 0)),          # lin3 weight
        ],
        out_specs=pl.BlockSpec((TB, HF), lambda b: (b, 0)),
        compiler_params=pltpu.CompilerParams(
            dimension_semantics=("parallel",),
            vmem_limit_bytes=32 << 20,                         # safe on v5e/v6e/v7x
        ),
        cost_estimate=pl.CostEstimate(flops=flops, transcendentals=0,
                                      bytes_accessed=bytes_accessed),
    )(x, sel, wc, b1, w3)
    return out[:B]


# ----------------------------- pure-JAX reference -----------------------------

def feature_extractor_reference(u, params, aggr='add'):
    """Direct transcription of the PyTorch forward (graph_class=True)."""
    n = u.shape[1]

    def aggregate(t, axis):
        if aggr == 'add':
            return jnp.sum(t, axis=axis)
        if aggr == 'mean':
            return jnp.mean(t, axis=axis)
        raise NotImplementedError(aggr)

    diag = jnp.diagonal(u, axis1=1, axis2=2)          # (B, C, N)
    trace = aggregate(diag, axis=2)                   # (B, C)
    out1 = (trace / n) @ params['w1'] + params['b1']
    s = aggregate(aggregate(u, axis=1), axis=1)       # (B, C)
    s = (s - trace) / (n * (n - 1))
    out = out1 + s @ params['w2']
    return out + jnp.maximum(out, 0.0) @ params['w3']


# ----------------------------- parameters -----------------------------

def init_params(key, c_in, c_out):
    k1, k2, k3, k4 = jax.random.split(key, 4)
    sc = 0.1
    return dict(
        w1=sc * jax.random.normal(k1, (c_in, c_out), dtype=jnp.float32),
        b1=sc * jax.random.normal(k2, (1, c_out), dtype=jnp.float32),
        w2=sc * jax.random.normal(k3, (c_in, c_out), dtype=jnp.float32),
        w3=sc * jax.random.normal(k4, (c_out, c_out), dtype=jnp.float32),
    )


# ----------------------------- main -----------------------------

if __name__ == "__main__":
    B, N, C_IN, C_OUT = 2, 16, 8, 32

    key = jax.random.PRNGKey(0)
    kparam, kdata = jax.random.split(key)
    params = init_params(kparam, C_IN, C_OUT)
    u = jax.random.normal(kdata, (B, N, N, C_IN), dtype=jnp.float32)

    for aggr in ('add', 'mean'):
        out = jax.block_until_ready(feature_extractor_forward(u, params, aggr=aggr))
        ref = jax.block_until_ready(feature_extractor_reference(u, params, aggr=aggr))
        assert out.shape == (B, C_OUT)
        np.testing.assert_allclose(np.asarray(out), np.asarray(ref),
                                   rtol=1e-2, atol=1e-2)

    print("KERNEL_OK")
</pallas_src>

<mosaic_0001>
module attributes {stable_mosaic.version = 11 : i64} {
  func.func @_fe_kernel(%arg0: i32, %arg1: memref<8x2048xf32, #tpu.memory_space<vmem>>, %arg2: memref<2048x16xf32, #tpu.memory_space<vmem>>, %arg3: memref<16x32xf32, #tpu.memory_space<vmem>>, %arg4: memref<1x32xf32, #tpu.memory_space<vmem>>, %arg5: memref<32x32xf32, #tpu.memory_space<vmem>>, %arg6: memref<8x32xf32, #tpu.memory_space<vmem>>) attributes {dimension_semantics = [#tpu.dimension_semantics<parallel>], iteration_bounds = array<i64: 1>, scalar_prefetch = 0 : i64, scratch_operands = 0 : i64, tpu.core_type = #tpu.core_type<tc>, window_params = [{transform_indices = @transform_0, window_bounds = array<i64: 8, 2048>}, {pipeline_mode = #tpu.pipeline_mode<synchronous>, transform_indices = @transform_1, window_bounds = array<i64: 2048, 16>}, {pipeline_mode = #tpu.pipeline_mode<synchronous>, transform_indices = @transform_2, window_bounds = array<i64: 16, 32>}, {pipeline_mode = #tpu.pipeline_mode<synchronous>, transform_indices = @transform_3, window_bounds = array<i64: 1, 32>}, {pipeline_mode = #tpu.pipeline_mode<synchronous>, transform_indices = @transform_4, window_bounds = array<i64: 32, 32>}, {transform_indices = @transform_5, window_bounds = array<i64: 8, 32>}]} {
    %c0 = arith.constant 0 : index
    %c0_0 = arith.constant 0 : index
    %0 = vector.load %arg1[%c0, %c0_0] : memref<8x2048xf32, #tpu.memory_space<vmem>>, vector<8x2048xf32>
    %c0_1 = arith.constant 0 : index
    %c0_2 = arith.constant 0 : index
    %1 = vector.load %arg2[%c0_1, %c0_2] : memref<2048x16xf32, #tpu.memory_space<vmem>>, vector<2048x16xf32>
    %cst = arith.constant dense<0.000000e+00> : vector<8x16xf32>
    %2 = tpu.matmul %0, %1, %cst {dimension_numbers = #tpu.dot_dimension_numbers<[1], [0], [0], [1], [0, 0, 1, 1], [], []>} : vector<8x2048xf32>, vector<2048x16xf32>, vector<8x16xf32> -> vector<8x16xf32>
    %c0_3 = arith.constant 0 : index
    %c0_4 = arith.constant 0 : index
    %3 = vector.load %arg3[%c0_3, %c0_4] : memref<16x32xf32, #tpu.memory_space<vmem>>, vector<16x32xf32>
    %cst_5 = arith.constant dense<0.000000e+00> : vector<8x32xf32>
    %4 = tpu.matmul %2, %3, %cst_5 {dimension_numbers = #tpu.dot_dimension_numbers<[1], [0], [0], [1], [0, 0, 1, 1], [], []>} : vector<8x16xf32>, vector<16x32xf32>, vector<8x32xf32> -> vector<8x32xf32>
    %c0_6 = arith.constant 0 : index
    %c0_7 = arith.constant 0 : index
    %5 = vector.load %arg4[%c0_6, %c0_7] : memref<1x32xf32, #tpu.memory_space<vmem>>, vector<1x32xf32>
    %6 = vector.broadcast %5 : vector<1x32xf32> to vector<8x32xf32>
    %7 = arith.addf %4, %6 : vector<8x32xf32>
    %cst_8 = arith.constant 0.000000e+00 : f32
    %8 = vector.broadcast %cst_8 : f32 to vector<8x32xf32>
    %9 = arith.maximumf %7, %8 : vector<8x32xf32>
    %c0_9 = arith.constant 0 : index
    %c0_10 = arith.constant 0 : index
    %10 = vector.load %arg5[%c0_9, %c0_10] : memref<32x32xf32, #tpu.memory_space<vmem>>, vector<32x32xf32>
    %cst_11 = arith.constant dense<0.000000e+00> : vector<8x32xf32>
    %11 = tpu.matmul %9, %10, %cst_11 {dimension_numbers = #tpu.dot_dimension_numbers<[1], [0], [0], [1], [0, 0, 1, 1], [], []>} : vector<8x32xf32>, vector<32x32xf32>, vector<8x32xf32> -> vector<8x32xf32>
    %12 = arith.addf %7, %11 : vector<8x32xf32>
    %c0_12 = arith.constant 0 : index
    %c0_13 = arith.constant 0 : index
    %13 = vector.load %arg6[%c0_12, %c0_13] : memref<8x32xf32, #tpu.memory_space<vmem>>, vector<8x32xf32>
    tpu.vector_store %arg6[%c0_12, %c0_13], %12 {strides = array<i32>} : memref<8x32xf32, #tpu.memory_space<vmem>>, vector<8x32xf32>,
    return
  }
  func.func @transform_0(%arg0: i32) -> (i32, i32) {
    %c0_i32 = arith.constant 0 : i32
    %c0_i32_0 = arith.constant 0 : i32
    return %arg0, %c0_i32 : i32, i32
  }
  func.func @transform_1(%arg0: i32) -> (i32, i32) {
    %c0_i32 = arith.constant 0 : i32
    %c0_i32_0 = arith.constant 0 : i32
    %c0_i32_1 = arith.constant 0 : i32
    return %c0_i32, %c0_i32_0 : i32, i32
  }
  func.func @transform_2(%arg0: i32) -> (i32, i32) {
    %c0_i32 = arith.constant 0 : i32
    %c0_i32_0 = arith.constant 0 : i32
    %c0_i32_1 = arith.constant 0 : i32
    return %c0_i32, %c0_i32_0 : i32, i32
  }
  func.func @transform_3(%arg0: i32) -> (i32, i32) {
    %c0_i32 = arith.constant 0 : i32
    %c0_i32_0 = arith.constant 0 : i32
    %c0_i32_1 = arith.constant 0 : i32
    return %c0_i32, %c0_i32_0 : i32, i32
  }
  func.func @transform_4(%arg0: i32) -> (i32, i32) {
    %c0_i32 = arith.constant 0 : i32
    %c0_i32_0 = arith.constant 0 : i32
    %c0_i32_1 = arith.constant 0 : i32
    return %c0_i32, %c0_i32_0 : i32, i32
  }
  func.func @transform_5(%arg0: i32) -> (i32, i32) {
    %c0_i32 = arith.constant 0 : i32
    %c0_i32_0 = arith.constant 0 : i32
    return %arg0, %c0_i32 : i32, i32
  }
}

</mosaic_0001>

<llo_original>
// kernel: tpu_custom_call.1
$region0: #{tpu_custom_call.1}
  #allocation0 [shape = 'u32[]', space=smem, size = 0x4, offset = 0x4, fixed_abs, tag = 'smem constant byte address 0x4 - core index']
  #allocation1 [shape = 'u32[144,128]{1,0:T(1,128)}', space=vmem, size = 0x12000, scoped, tag = 'internal scratch']
  %s0 = inlined_call_operand.vmem [shape: f32[8,2048], index: 0, kind: input, shape index: {}]
  %s1 = inlined_call_operand.vmem [shape: f32[2048,16], index: 1, kind: input, shape index: {}]
  %s2 = inlined_call_operand.vmem [shape: f32[16,32], index: 2, kind: input, shape index: {}]
  %s3 = inlined_call_operand.vmem [shape: f32[1,32], index: 3, kind: input, shape index: {}]
  %s4 = inlined_call_operand.vmem [shape: f32[32,32], index: 4, kind: input, shape index: {}]
  %s5 = inlined_call_operand.hbm [shape: f32[8,32], index: 5, kind: output, shape index: {}]
  %s6 = sld [smem:[#allocation0]]
  $region30: #{tpu_custom_call.1} parent=0
    _
  %s8 = ssub.s32 1, %s6
  %s9 = scalar_select 0, %s8, %s6
  $region1: #{tpu_custom_call.1} parent=0
    #allocation2 [shape = 'u8[4096]{0}', space=vmem, size = 0x1000, scoped, tag = 'output window, operand 0, single buffered']
    #allocation3 [shape = 's32[1]{0}', space=sflag, size = 0x4, scoped, tag = 'scoped memory for tpu_custom_call.1']
    %10 = vsyncpa [#allocation3], 0
    // Predicated region
    $region2: #{tpu_custom_call.1} parent=1 // pred_check
      _
    $region3: #{tpu_custom_call.1} parent=1 // pred_check_branch
      %12 = sbr.rel (0) target = $region5
    $region4: #{tpu_custom_call.1} parent=1 // pred_region
      _
    $region5: #{tpu_custom_call.1} parent=1 // pred_fallthru
      _
    // Predicated region
    $region6: #{tpu_custom_call.1} parent=1 // pred_check
      _
    $region7: #{tpu_custom_call.1} parent=1 // pred_check_branch
      %14 = sbr.rel (0) target = $region9
    $region8: #{tpu_custom_call.1} parent=1 // pred_region
      _
    $region9: #{tpu_custom_call.1} parent=1 // pred_fallthru
      _
    // Predicated region
    $region10: #{tpu_custom_call.1} parent=1 // pred_check
      _
    $region11: #{tpu_custom_call.1} parent=1 // pred_check_branch
      %16 = sbr.rel (0) target = $region13
    $region12: #{tpu_custom_call.1} parent=1 // pred_region
      _
    $region13: #{tpu_custom_call.1} parent=1 // pred_fallthru
      _
    // Predicated region
    $region14: #{tpu_custom_call.1} parent=1 // pred_check
      _
    $region15: #{tpu_custom_call.1} parent=1 // pred_check_branch
      %18 = sbr.rel (0) target = $region17
    $region16: #{tpu_custom_call.1} parent=1 // pred_region
      _
    $region17: #{tpu_custom_call.1} parent=1 // pred_fallthru
      _
    // Predicated region
    $region18: #{tpu_custom_call.1} parent=1 // pred_check
      _
    $region19: #{tpu_custom_call.1} parent=1 // pred_check_branch
      %20 = sbr.rel (0) target = $region21
    $region20: #{tpu_custom_call.1} parent=1 // pred_region
      _
    $region21: #{tpu_custom_call.1} parent=1 // pred_fallthru
      _
    %v21 = vld [vmem:[%s0] sm:$0xff]
    %v22 = vld [vmem:[%s0 + $0x8] sm:$0xff]
    %v23 = vld [vmem:[%s0 + $0x10] sm:$0xff]
    %v24 = vld [vmem:[%s0 + $0x18] sm:$0xff]
    %v25 = vld [vmem:[%s0 + $0x20] sm:$0xff]
    %v26 = vld [vmem:[%s0 + $0x28] sm:$0xff]
    %v27 = vld [vmem:[%s0 + $0x30] sm:$0xff]
    %v28 = vld [vmem:[%s0 + $0x38] sm:$0xff]
    %v29 = vld [vmem:[%s0 + $0x40] sm:$0xff]
    %v30 = vld [vmem:[%s0 + $0x48] sm:$0xff]
    %v31 = vld [vmem:[%s0 + $0x50] sm:$0xff]
    %v32 = vld [vmem:[%s0 + $0x58] sm:$0xff]
    %v33 = vld [vmem:[%s0 + $0x60] sm:$0xff]
    %v34 = vld [vmem:[%s0 + $0x68] sm:$0xff]
    %v35 = vld [vmem:[%s0 + $0x70] sm:$0xff]
    %v36 = vld [vmem:[%s0 + $0x78] sm:$0xff]
    %v37 = vld [vmem:[%s1] sm:$0xff]
    %v38 = vld [vmem:[%s1 + $0x8] sm:$0xff]
    %v39 = vld [vmem:[%s1 + $0x10] sm:$0xff]
    %v40 = vld [vmem:[%s1 + $0x18] sm:$0xff]
    %v41 = vld [vmem:[%s1 + $0x20] sm:$0xff]
    %v42 = vld [vmem:[%s1 + $0x28] sm:$0xff]
    %v43 = vld [vmem:[%s1 + $0x30] sm:$0xff]
    %v44 = vld [vmem:[%s1 + $0x38] sm:$0xff]
    %v45 = vld [vmem:[%s1 + $0x40] sm:$0xff]
    %v46 = vld [vmem:[%s1 + $0x48] sm:$0xff]
    %v47 = vld [vmem:[%s1 + $0x50] sm:$0xff]
    %v48 = vld [vmem:[%s1 + $0x58] sm:$0xff]
    %v49 = vld [vmem:[%s1 + $0x60] sm:$0xff]
    %v50 = vld [vmem:[%s1 + $0x68] sm:$0xff]
    %v51 = vld [vmem:[%s1 + $0x70] sm:$0xff]
    %v52 = vld [vmem:[%s1 + $0x78] sm:$0xff]
    %v53 = vld [vmem:[%s1 + $0x80] sm:$0xff]
    %v54 = vld [vmem:[%s1 + $0x88] sm:$0xff]
    %v55 = vld [vmem:[%s1 + $0x90] sm:$0xff]
    %v56 = vld [vmem:[%s1 + $0x98] sm:$0xff]
    %v57 = vld [vmem:[%s1 + $0xa0] sm:$0xff]
    %v58 = vld [vmem:[%s1 + $0xa8] sm:$0xff]
    %v59 = vld [vmem:[%s1 + $0xb0] sm:$0xff]
    %v60 = vld [vmem:[%s1 + $0xb8] sm:$0xff]
    %v61 = vld [vmem:[%s1 + $0xc0] sm:$0xff]
    %v62 = vld [vmem:[%s1 + $0xc8] sm:$0xff]
    %v63 = vld [vmem:[%s1 + $0xd0] sm:$0xff]
    %v64 = vld [vmem:[%s1 + $0xd8] sm:$0xff]
    %v65 = vld [vmem:[%s1 + $0xe0] sm:$0xff]
    %v66 = vld [vmem:[%s1 + $0xe8] sm:$0xff]
    %v67 = vld [vmem:[%s1 + $0xf0] sm:$0xff]
    %v68 = vld [vmem:[%s1 + $0xf8] sm:$0xff]
    %v69 = vld [vmem:[%s1 + $0x100] sm:$0xff]
    %v70 = vld [vmem:[%s1 + $0x108] sm:$0xff]
    %v71 = vld [vmem:[%s1 + $0x110] sm:$0xff]
    %v72 = vld [vmem:[%s1 + $0x118] sm:$0xff]
    %v73 = vld [vmem:[%s1 + $0x120] sm:$0xff]
    %v74 = vld [vmem:[%s1 + $0x128] sm:$0xff]
    %v75 = vld [vmem:[%s1 + $0x130] sm:$0xff]
    %v76 = vld [vmem:[%s1 + $0x138] sm:$0xff]
    %v77 = vld [vmem:[%s1 + $0x140] sm:$0xff]
    %v78 = vld [vmem:[%s1 + $0x148] sm:$0xff]
    %v79 = vld [vmem:[%s1 + $0x150] sm:$0xff]
    %v80 = vld [vmem:[%s1 + $0x158] sm:$0xff]
    %v81 = vld [vmem:[%s1 + $0x160] sm:$0xff]
    %v82 = vld [vmem:[%s1 + $0x168] sm:$0xff]
    %v83 = vld [vmem:[%s1 + $0x170] sm:$0xff]
    %v84 = vld [vmem:[%s1 + $0x178] sm:$0xff]
    %v85 = vld [vmem:[%s1 + $0x180] sm:$0xff]
    %v86 = vld [vmem:[%s1 + $0x188] sm:$0xff]
    %v87 = vld [vmem:[%s1 + $0x190] sm:$0xff]
    %v88 = vld [vmem:[%s1 + $0x198] sm:$0xff]
    %v89 = vld [vmem:[%s1 + $0x1a0] sm:$0xff]
    %v90 = vld [vmem:[%s1 + $0x1a8] sm:$0xff]
    %v91 = vld [vmem:[%s1 + $0x1b0] sm:$0xff]
    %v92 = vld [vmem:[%s1 + $0x1b8] sm:$0xff]
    %v93 = vld [vmem:[%s1 + $0x1c0] sm:$0xff]
    %v94 = vld [vmem:[%s1 + $0x1c8] sm:$0xff]
    %v95 = vld [vmem:[%s1 + $0x1d0] sm:$0xff]
    %v96 = vld [vmem:[%s1 + $0x1d8] sm:$0xff]
    %v97 = vld [vmem:[%s1 + $0x1e0] sm:$0xff]
    %v98 = vld [vmem:[%s1 + $0x1e8] sm:$0xff]
    %v99 = vld [vmem:[%s1 + $0x1f0] sm:$0xff]
    %v100 = vld [vmem:[%s1 + $0x1f8] sm:$0xff]
    %v101 = vld [vmem:[%s1 + $0x200] sm:$0xff]
    %v102 = vld [vmem:[%s1 + $0x208] sm:$0xff]
    %v103 = vld [vmem:[%s1 + $0x210] sm:$0xff]
    %v104 = vld [vmem:[%s1 + $0x218] sm:$0xff]
    %v105 = vld [vmem:[%s1 + $0x220] sm:$0xff]
    %v106 = vld [vmem:[%s1 + $0x228] sm:$0xff]
    %v107 = vld [vmem:[%s1 + $0x230] sm:$0xff]
    %v108 = vld [vmem:[%s1 + $0x238] sm:$0xff]
    %v109 = vld [vmem:[%s1 + $0x240] sm:$0xff]
    %v110 = vld [vmem:[%s1 + $0x248] sm:$0xff]
    %v111 = vld [vmem:[%s1 + $0x250] sm:$0xff]
    %v112 = vld [vmem:[%s1 + $0x258] sm:$0xff]
    %v113 = vld [vmem:[%s1 + $0x260] sm:$0xff]
    %v114 = vld [vmem:[%s1 + $0x268] sm:$0xff]
    %v115 = vld [vmem:[%s1 + $0x270] sm:$0xff]
    %v116 = vld [vmem:[%s1 + $0x278] sm:$0xff]
    %v117 = vld [vmem:[%s1 + $0x280] sm:$0xff]
    %v118 = vld [vmem:[%s1 + $0x288] sm:$0xff]
    %v119 = vld [vmem:[%s1 + $0x290] sm:$0xff]
    %v120 = vld [vmem:[%s1 + $0x298] sm:$0xff]
    %v121 = vld [vmem:[%s1 + $0x2a0] sm:$0xff]
    %v122 = vld [vmem:[%s1 + $0x2a8] sm:$0xff]
    %v123 = vld [vmem:[%s1 + $0x2b0] sm:$0xff]
    %v124 = vld [vmem:[%s1 + $0x2b8] sm:$0xff]
    %v125 = vld [vmem:[%s1 + $0x2c0] sm:$0xff]
    %v126 = vld [vmem:[%s1 + $0x2c8] sm:$0xff]
    %v127 = vld [vmem:[%s1 + $0x2d0] sm:$0xff]
    %v128 = vld [vmem:[%s1 + $0x2d8] sm:$0xff]
    %v129 = vld [vmem:[%s1 + $0x2e0] sm:$0xff]
    %v130 = vld [vmem:[%s1 + $0x2e8] sm:$0xff]
    %v131 = vld [vmem:[%s1 + $0x2f0] sm:$0xff]
    %v132 = vld [vmem:[%s1 + $0x2f8] sm:$0xff]
    %v133 = vld [vmem:[%s1 + $0x300] sm:$0xff]
    %v134 = vld [vmem:[%s1 + $0x308] sm:$0xff]
    %v135 = vld [vmem:[%s1 + $0x310] sm:$0xff]
    %v136 = vld [vmem:[%s1 + $0x318] sm:$0xff]
    %v137 = vld [vmem:[%s1 + $0x320] sm:$0xff]
    %v138 = vld [vmem:[%s1 + $0x328] sm:$0xff]
    %v139 = vld [vmem:[%s1 + $0x330] sm:$0xff]
    %v140 = vld [vmem:[%s1 + $0x338] sm:$0xff]
    %v141 = vld [vmem:[%s1 + $0x340] sm:$0xff]
    %v142 = vld [vmem:[%s1 + $0x348] sm:$0xff]
    %v143 = vld [vmem:[%s1 + $0x350] sm:$0xff]
    %v144 = vld [vmem:[%s1 + $0x358] sm:$0xff]
    %v145 = vld [vmem:[%s1 + $0x360] sm:$0xff]
    %v146 = vld [vmem:[%s1 + $0x368] sm:$0xff]
    %v147 = vld [vmem:[%s1 + $0x370] sm:$0xff]
    %v148 = vld [vmem:[%s1 + $0x378] sm:$0xff]
    %v149 = vld [vmem:[%s1 + $0x380] sm:$0xff]
    %v150 = vld [vmem:[%s1 + $0x388] sm:$0xff]
    %v151 = vld [vmem:[%s1 + $0x390] sm:$0xff]
    %v152 = vld [vmem:[%s1 + $0x398] sm:$0xff]
    %v153 = vld [vmem:[%s1 + $0x3a0] sm:$0xff]
    %v154 = vld [vmem:[%s1 + $0x3a8] sm:$0xff]
    %v155 = vld [vmem:[%s1 + $0x3b0] sm:$0xff]
    %v156 = vld [vmem:[%s1 + $0x3b8] sm:$0xff]
    %v157 = vld [vmem:[%s1 + $0x3c0] sm:$0xff]
    %v158 = vld [vmem:[%s1 + $0x3c8] sm:$0xff]
    %v159 = vld [vmem:[%s1 + $0x3d0] sm:$0xff]
    %v160 = vld [vmem:[%s1 + $0x3d8] sm:$0xff]
    %v161 = vld [vmem:[%s1 + $0x3e0] sm:$0xff]
    %v162 = vld [vmem:[%s1 + $0x3e8] sm:$0xff]
    %v163 = vld [vmem:[%s1 + $0x3f0] sm:$0xff]
    %v164 = vld [vmem:[%s1 + $0x3f8] sm:$0xff]
    %v165 = vld [vmem:[%s1 + $0x400] sm:$0xff]
    %v166 = vld [vmem:[%s1 + $0x408] sm:$0xff]
    %v167 = vld [vmem:[%s1 + $0x410] sm:$0xff]
    %v168 = vld [vmem:[%s1 + $0x418] sm:$0xff]
    %v169 = vld [vmem:[%s1 + $0x420] sm:$0xff]
    %v170 = vld [vmem:[%s1 + $0x428] sm:$0xff]
    %v171 = vld [vmem:[%s1 + $0x430] sm:$0xff]
    %v172 = vld [vmem:[%s1 + $0x438] sm:$0xff]
    %v173 = vld [vmem:[%s1 + $0x440] sm:$0xff]
    %v174 = vld [vmem:[%s1 + $0x448] sm:$0xff]
    %v175 = vld [vmem:[%s1 + $0x450] sm:$0xff]
    %v176 = vld [vmem:[%s1 + $0x458] sm:$0xff]
    %v177 = vld [vmem:[%s1 + $0x460] sm:$0xff]
    %v178 = vld [vmem:[%s1 + $0x468] sm:$0xff]
    %v179 = vld [vmem:[%s1 + $0x470] sm:$0xff]
    %v180 = vld [vmem:[%s1 + $0x478] sm:$0xff]
    %v181 = vld [vmem:[%s1 + $0x480] sm:$0xff]
    %v182 = vld [vmem:[%s1 + $0x488] sm:$0xff]
    %v183 = vld [vmem:[%s1 + $0x490] sm:$0xff]
    %v184 = vld [vmem:[%s1 + $0x498] sm:$0xff]
    %v185 = vld [vmem:[%s1 + $0x4a0] sm:$0xff]
    %v186 = vld [vmem:[%s1 + $0x4a8] sm:$0xff]
    %v187 = vld [vmem:[%s1 + $0x4b0] sm:$0xff]
    %v188 = vld [vmem:[%s1 + $0x4b8] sm:$0xff]
    %v189 = vld [vmem:[%s1 + $0x4c0] sm:$0xff]
    %v190 = vld [vmem:[%s1 + $0x4c8] sm:$0xff]
    %v191 = vld [vmem:[%s1 + $0x4d0] sm:$0xff]
    %v192 = vld [vmem:[%s1 + $0x4d8] sm:$0xff]
    %v193 = vld [vmem:[%s1 + $0x4e0] sm:$0xff]
    %v194 = vld [vmem:[%s1 + $0x4e8] sm:$0xff]
    %v195 = vld [vmem:[%s1 + $0x4f0] sm:$0xff]
    %v196 = vld [vmem:[%s1 + $0x4f8] sm:$0xff]
    %v197 = vld [vmem:[%s1 + $0x500] sm:$0xff]
    %v198 = vld [vmem:[%s1 + $0x508] sm:$0xff]
    %v199 = vld [vmem:[%s1 + $0x510] sm:$0xff]
    %v200 = vld [vmem:[%s1 + $0x518] sm:$0xff]
    %v201 = vld [vmem:[%s1 + $0x520] sm:$0xff]
    %v202 = vld [vmem:[%s1 + $0x528] sm:$0xff]
    %v203 = vld [vmem:[%s1 + $0x530] sm:$0xff]
    %v204 = vld [vmem:[%s1 + $0x538] sm:$0xff]
    %v205 = vld [vmem:[%s1 + $0x540] sm:$0xff]
    %v206 = vld [vmem:[%s1 + $0x548] sm:$0xff]
    %v207 = vld [vmem:[%s1 + $0x550] sm:$0xff]
    %v208 = vld [vmem:[%s1 + $0x558] sm:$0xff]
    %v209 = vld [vmem:[%s1 + $0x560] sm:$0xff]
    %v210 = vld [vmem:[%s1 + $0x568] sm:$0xff]
    %v211 = vld [vmem:[%s1 + $0x570] sm:$0xff]
    %v212 = vld [vmem:[%s1 + $0x578] sm:$0xff]
    %v213 = vld [vmem:[%s1 + $0x580] sm:$0xff]
    %v214 = vld [vmem:[%s1 + $0x588] sm:$0xff]
    %v215 = vld [vmem:[%s1 + $0x590] sm:$0xff]
    %v216 = vld [vmem:[%s1 + $0x598] sm:$0xff]
    %v217 = vld [vmem:[%s1 + $0x5a0] sm:$0xff]
    %v218 = vld [vmem:[%s1 + $0x5a8] sm:$0xff]
    %v219 = vld [vmem:[%s1 + $0x5b0] sm:$0xff]
    %v220 = vld [vmem:[%s1 + $0x5b8] sm:$0xff]
    %v221 = vld [vmem:[%s1 + $0x5c0] sm:$0xff]
    %v222 = vld [vmem:[%s1 + $0x5c8] sm:$0xff]
    %v223 = vld [vmem:[%s1 + $0x5d0] sm:$0xff]
    %v224 = vld [vmem:[%s1 + $0x5d8] sm:$0xff]
    %v225 = vld [vmem:[%s1 + $0x5e0] sm:$0xff]
    %v226 = vld [vmem:[%s1 + $0x5e8] sm:$0xff]
    %v227 = vld [vmem:[%s1 + $0x5f0] sm:$0xff]
    %v228 = vld [vmem:[%s1 + $0x5f8] sm:$0xff]
    %v229 = vld [vmem:[%s1 + $0x600] sm:$0xff]
    %v230 = vld [vmem:[%s1 + $0x608] sm:$0xff]
    %v231 = vld [vmem:[%s1 + $0x610] sm:$0xff]
    %v232 = vld [vmem:[%s1 + $0x618] sm:$0xff]
    %v233 = vld [vmem:[%s1 + $0x620] sm:$0xff]
    %v234 = vld [vmem:[%s1 + $0x628] sm:$0xff]
    %v235 = vld [vmem:[%s1 + $0x630] sm:$0xff]
    %v236 = vld [vmem:[%s1 + $0x638] sm:$0xff]
    %v237 = vld [vmem:[%s1 + $0x640] sm:$0xff]
    %v238 = vld [vmem:[%s1 + $0x648] sm:$0xff]
    %v239 = vld [vmem:[%s1 + $0x650] sm:$0xff]
    %v240 = vld [vmem:[%s1 + $0x658] sm:$0xff]
    %v241 = vld [vmem:[%s1 + $0x660] sm:$0xff]
    %v242 = vld [vmem:[%s1 + $0x668] sm:$0xff]
    %v243 = vld [vmem:[%s1 + $0x670] sm:$0xff]
    %v244 = vld [vmem:[%s1 + $0x678] sm:$0xff]
    %v245 = vld [vmem:[%s1 + $0x680] sm:$0xff]
    %v246 = vld [vmem:[%s1 + $0x688] sm:$0xff]
    %v247 = vld [vmem:[%s1 + $0x690] sm:$0xff]
    %v248 = vld [vmem:[%s1 + $0x698] sm:$0xff]
    %v249 = vld [vmem:[%s1 + $0x6a0] sm:$0xff]
    %v250 = vld [vmem:[%s1 + $0x6a8] sm:$0xff]
    %v251 = vld [vmem:[%s1 + $0x6b0] sm:$0xff]
    %v252 = vld [vmem:[%s1 + $0x6b8] sm:$0xff]
    %v253 = vld [vmem:[%s1 + $0x6c0] sm:$0xff]
    %v254 = vld [vmem:[%s1 + $0x6c8] sm:$0xff]
    %v255 = vld [vmem:[%s1 + $0x6d0] sm:$0xff]
    %v256 = vld [vmem:[%s1 + $0x6d8] sm:$0xff]
    %v257 = vld [vmem:[%s1 + $0x6e0] sm:$0xff]
    %v258 = vld [vmem:[%s1 + $0x6e8] sm:$0xff]
    %v259 = vld [vmem:[%s1 + $0x6f0] sm:$0xff]
    %v260 = vld [vmem:[%s1 + $0x6f8] sm:$0xff]
    %v261 = vld [vmem:[%s1 + $0x700] sm:$0xff]
    %v262 = vld [vmem:[%s1 + $0x708] sm:$0xff]
    %v263 = vld [vmem:[%s1 + $0x710] sm:$0xff]
    %v264 = vld [vmem:[%s1 + $0x718] sm:$0xff]
    %v265 = vld [vmem:[%s1 + $0x720] sm:$0xff]
    %v266 = vld [vmem:[%s1 + $0x728] sm:$0xff]
    %v267 = vld [vmem:[%s1 + $0x730] sm:$0xff]
    %v268 = vld [vmem:[%s1 + $0x738] sm:$0xff]
    %v269 = vld [vmem:[%s1 + $0x740] sm:$0xff]
    %v270 = vld [vmem:[%s1 + $0x748] sm:$0xff]
    %v271 = vld [vmem:[%s1 + $0x750] sm:$0xff]
    %v272 = vld [vmem:[%s1 + $0x758] sm:$0xff]
    %v273 = vld [vmem:[%s1 + $0x760] sm:$0xff]
    %v274 = vld [vmem:[%s1 + $0x768] sm:$0xff]
    %v275 = vld [vmem:[%s1 + $0x770] sm:$0xff]
    %v276 = vld [vmem:[%s1 + $0x778] sm:$0xff]
    %v277 = vld [vmem:[%s1 + $0x780] sm:$0xff]
    %v278 = vld [vmem:[%s1 + $0x788] sm:$0xff]
    %v279 = vld [vmem:[%s1 + $0x790] sm:$0xff]
    %v280 = vld [vmem:[%s1 + $0x798] sm:$0xff]
    %v281 = vld [vmem:[%s1 + $0x7a0] sm:$0xff]
    %v282 = vld [vmem:[%s1 + $0x7a8] sm:$0xff]
    %v283 = vld [vmem:[%s1 + $0x7b0] sm:$0xff]
    %v284 = vld [vmem:[%s1 + $0x7b8] sm:$0xff]
    %v285 = vld [vmem:[%s1 + $0x7c0] sm:$0xff]
    %v286 = vld [vmem:[%s1 + $0x7c8] sm:$0xff]
    %v287 = vld [vmem:[%s1 + $0x7d0] sm:$0xff]
    %v288 = vld [vmem:[%s1 + $0x7d8] sm:$0xff]
    %v289 = vld [vmem:[%s1 + $0x7e0] sm:$0xff]
    %v290 = vld [vmem:[%s1 + $0x7e8] sm:$0xff]
    %v291 = vld [vmem:[%s1 + $0x7f0] sm:$0xff]
    %v292 = vld [vmem:[%s1 + $0x7f8] sm:$0xff]
    %293 = vmatprep.subr.mxu0 0.0
    %294 = vmatpush1.msra.mxu0 %v37
    %295 = vmatprep.subr.mxu0 0.0
    %296 = vmatpush1.msra.mxu0 %v38
    %297 = vmatprep.subr.mxu0 0.0
    %298 = vmatpush1.msra.mxu0 %v39
    %299 = vmatprep.subr.mxu0 0.0
    %300 = vmatpush1.msra.mxu0 %v40
    %301 = vmatprep.subr.mxu0 0.0
    %302 = vmatpush1.msra.mxu0 %v41
    %303 = vmatprep.subr.mxu0 0.0
    %304 = vmatpush1.msra.mxu0 %v42
    %305 = vmatprep.subr.mxu0 0.0
    %306 = vmatpush1.msra.mxu0 %v43
    %307 = vmatprep.subr.mxu0 0.0
    %308 = vmatpush1.msra.mxu0 %v44
    %309 = vmatprep.subr.mxu0 0.0
    %310 = vmatpush1.msra.mxu0 %v45
    %311 = vmatprep.subr.mxu0 0.0
    %312 = vmatpush1.msra.mxu0 %v46
    %313 = vmatprep.subr.mxu0 0.0
    %314 = vmatpush1.msra.mxu0 %v47
    %315 = vmatprep.subr.mxu0 0.0
    %316 = vmatpush1.msra.mxu0 %v48
    %317 = vmatprep.subr.mxu0 0.0
    %318 = vmatpush1.msra.mxu0 %v49
    %319 = vmatprep.subr.mxu0 0.0
    %320 = vmatpush1.msra.mxu0 %v50
    %321 = vmatprep.subr.mxu0 0.0
    %322 = vmatpush1.msra.mxu0 %v51
    %323 = vmatprep.subr.mxu0 0.0
    %324 = vmatpush1.msra.mxu0 %v52
    %325 = vmatprep.subr.mxu0 0.0
    %326 = vmatpush1.msra.mxu0 %v53
    %327 = vmatprep.subr.mxu0 0.0
    %328 = vmatpush1.msra.mxu0 %v54
    %329 = vmatprep.subr.mxu0 0.0
    %330 = vmatpush1.msra.mxu0 %v55
    %331 = vmatprep.subr.mxu0 0.0
    %332 = vmatpush1.msra.mxu0 %v56
    %333 = vmatprep.subr.mxu0 0.0
    %334 = vmatpush1.msra.mxu0 %v57
    %335 = vmatprep.subr.mxu0 0.0
    %336 = vmatpush1.msra.mxu0 %v58
    %337 = vmatprep.subr.mxu0 0.0
    %338 = vmatpush1.msra.mxu0 %v59
    %339 = vmatprep.subr.mxu0 0.0
    %340 = vmatpush1.msra.mxu0 %v60
    %341 = vmatprep.subr.mxu0 0.0
    %342 = vmatpush1.msra.mxu0 %v61
    %343 = vmatprep.subr.mxu0 0.0
    %344 = vmatpush1.msra.mxu0 %v62
    %345 = vmatprep.subr.mxu0 0.0
    %346 = vmatpush1.msra.mxu0 %v63
    %347 = vmatprep.subr.mxu0 0.0
    %348 = vmatpush1.msra.mxu0 %v64
    %349 = vmatprep.subr.mxu0 0.0
    %350 = vmatpush1.msra.mxu0 %v65
    %351 = vmatprep.subr.mxu0 0.0
    %352 = vmatpush1.msra.mxu0 %v66
    %353 = vmatprep.subr.mxu0 0.0
    %354 = vmatpush1.msra.mxu0 %v67
    %355 = vmatprep.subr.mxu0 0.0
    %356 = vmatpush1.msra.mxu0 %v68
    %357 = vmatprep.mubr.f32.mxu0 %v22
    %358 = vmatmul.mubr.f32.gmra.mrb[0].mxu0 %v21
    %v359 = vpop.f32.mrb[0].mxu0
    %v360 = vadd.f32 0.0, %v359
    %v361 = vpop.f32.mrb[0].mxu0
    %362 = vdwg.mxu0
    %363 = vmatprep.subr.mxu0 0.0
    %364 = vmatpush1.msra.mxu0 %v69
    %365 = vmatprep.subr.mxu0 0.0
    %366 = vmatpush1.msra.mxu0 %v70
    %367 = vmatprep.subr.mxu0 0.0
    %368 = vmatpush1.msra.mxu0 %v71
    %369 = vmatprep.subr.mxu0 0.0
    %370 = vmatpush1.msra.mxu0 %v72
    %371 = vmatprep.subr.mxu0 0.0
    %372 = vmatpush1.msra.mxu0 %v73
    %373 = vmatprep.subr.mxu0 0.0
    %374 = vmatpush1.msra.mxu0 %v74
    %375 = vmatprep.subr.mxu0 0.0
    %376 = vmatpush1.msra.mxu0 %v75
    %377 = vmatprep.subr.mxu0 0.0
    %378 = vmatpush1.msra.mxu0 %v76
    %379 = vmatprep.subr.mxu0 0.0
    %380 = vmatpush1.msra.mxu0 %v77
    %381 = vmatprep.subr.mxu0 0.0
    %382 = vmatpush1.msra.mxu0 %v78
    %383 = vmatprep.subr.mxu0 0.0
    %384 = vmatpush1.msra.mxu0 %v79
    %385 = vmatprep.subr.mxu0 0.0
    %386 = vmatpush1.msra.mxu0 %v80
    %387 = vmatprep.subr.mxu0 0.0
    %388 = vmatpush1.msra.mxu0 %v81
    %389 = vmatprep.subr.mxu0 0.0
    %390 = vmatpush1.msra.mxu0 %v82
    %391 = vmatprep.subr.mxu0 0.0
    %392 = vmatpush1.msra.mxu0 %v83
    %393 = vmatprep.subr.mxu0 0.0
    %394 = vmatpush1.msra.mxu0 %v84
    %395 = vmatprep.subr.mxu0 0.0
    %396 = vmatpush1.msra.mxu0 %v85
    %397 = vmatprep.subr.mxu0 0.0
    %398 = vmatpush1.msra.mxu0 %v86
    %399 = vmatprep.subr.mxu0 0.0
    %400 = vmatpush1.msra.mxu0 %v87
    %401 = vmatprep.subr.mxu0 0.0
    %402 = vmatpush1.msra.mxu0 %v88
    %403 = vmatprep.subr.mxu0 0.0
    %404 = vmatpush1.msra.mxu0 %v89
    %405 = vmatprep.subr.mxu0 0.0
    %406 = vmatpush1.msra.mxu0 %v90
    %407 = vmatprep.subr.mxu0 0.0
    %408 = vmatpush1.msra.mxu0 %v91
    %409 = vmatprep.subr.mxu0 0.0
    %410 = vmatpush1.msra.mxu0 %v92
    %411 = vmatprep.subr.mxu0 0.0
    %412 = vmatpush1.msra.mxu0 %v93
    %413 = vmatprep.subr.mxu0 0.0
    %414 = vmatpush1.msra.mxu0 %v94
    %415 = vmatprep.subr.mxu0 0.0
    %416 = vmatpush1.msra.mxu0 %v95
    %417 = vmatprep.subr.mxu0 0.0
    %418 = vmatpush1.msra.mxu0 %v96
    %419 = vmatprep.subr.mxu0 0.0
    %420 = vmatpush1.msra.mxu0 %v97
    %421 = vmatprep.subr.mxu0 0.0
    %422 = vmatpush1.msra.mxu0 %v98
    %423 = vmatprep.subr.mxu0 0.0
    %424 = vmatpush1.msra.mxu0 %v99
    %425 = vmatprep.subr.mxu0 0.0
    %426 = vmatpush1.msra.mxu0 %v100
    %427 = vmatprep.mubr.f32.mxu0 %v24
    %428 = vmatmul.mubr.f32.gmra.mrb[0].mxu0 %v23
    %v429 = vpop.f32.mrb[0].mxu0
    %v430 = vadd.f32 %v360, %v429
    %v431 = vpop.f32.mrb[0].mxu0
    %432 = vdwg.mxu0
    %433 = vmatprep.subr.mxu0 0.0
    %434 = vmatpush1.msra.mxu0 %v101
    %435 = vmatprep.subr.mxu0 0.0
    %436 = vmatpush1.msra.mxu0 %v102
    %437 = vmatprep.subr.mxu0 0.0
    %438 = vmatpush1.msra.mxu0 %v103
    %439 = vmatprep.subr.mxu0 0.0
    %440 = vmatpush1.msra.mxu0 %v104
    %441 = vmatprep.subr.mxu0 0.0
    %442 = vmatpush1.msra.mxu0 %v105
    %443 = vmatprep.subr.mxu0 0.0
    %444 = vmatpush1.msra.mxu0 %v106
    %445 = vmatprep.subr.mxu0 0.0
    %446 = vmatpush1.msra.mxu0 %v107
    %447 = vmatprep.subr.mxu0 0.0
    %448 = vmatpush1.msra.mxu0 %v108
    %449 = vmatprep.subr.mxu0 0.0
    %450 = vmatpush1.msra.mxu0 %v109
    %451 = vmatprep.subr.mxu0 0.0
    %452 = vmatpush1.msra.mxu0 %v110
    %453 = vmatprep.subr.mxu0 0.0
    %454 = vmatpush1.msra.mxu0 %v111
    %455 = vmatprep.subr.mxu0 0.0
    %456 = vmatpush1.msra.mxu0 %v112
    %457 = vmatprep.subr.mxu0 0.0
    %458 = vmatpush1.msra.mxu0 %v113
    %459 = vmatprep.subr.mxu0 0.0
    %460 = vmatpush1.msra.mxu0 %v114
    %461 = vmatprep.subr.mxu0 0.0
    %462 = vmatpush1.msra.mxu0 %v115
    %463 = vmatprep.subr.mxu0 0.0
    %464 = vmatpush1.msra.mxu0 %v116
    %465 = vmatprep.subr.mxu0 0.0
    %466 = vmatpush1.msra.mxu0 %v117
    %467 = vmatprep.subr.mxu0 0.0
    %468 = vmatpush1.msra.mxu0 %v118
    %469 = vmatprep.subr.mxu0 0.0
    %470 = vmatpush1.msra.mxu0 %v119
    %471 = vmatprep.subr.mxu0 0.0
    %472 = vmatpush1.msra.mxu0 %v120
    %473 = vmatprep.subr.mxu0 0.0
    %474 = vmatpush1.msra.mxu0 %v121
    %475 = vmatprep.subr.mxu0 0.0
    %476 = vmatpush1.msra.mxu0 %v122
    %477 = vmatprep.subr.mxu0 0.0
    %478 = vmatpush1.msra.mxu0 %v123
    %479 = vmatprep.subr.mxu0 0.0
    %480 = vmatpush1.msra.mxu0 %v124
    %481 = vmatprep.subr.mxu0 0.0
    %482 = vmatpush1.msra.mxu0 %v125
    %483 = vmatprep.subr.mxu0 0.0
    %484 = vmatpush1.msra.mxu0 %v126
    %485 = vmatprep.subr.mxu0 0.0
    %486 = vmatpush1.msra.mxu0 %v127
    %487 = vmatprep.subr.mxu0 0.0
    %488 = vmatpush1.msra.mxu0 %v128
    %489 = vmatprep.subr.mxu0 0.0
    %490 = vmatpush1.msra.mxu0 %v129
    %491 = vmatprep.subr.mxu0 0.0
    %492 = vmatpush1.msra.mxu0 %v130
    %493 = vmatprep.subr.mxu0 0.0
    %494 = vmatpush1.msra.mxu0 %v131
    %495 = vmatprep.subr.mxu0 0.0
    %496 = vmatpush1.msra.mxu0 %v132
    %497 = vmatprep.mubr.f32.mxu0 %v26
    %498 = vmatmul.mubr.f32.gmra.mrb[0].mxu0 %v25
    %v499 = vpop.f32.mrb[0].mxu0
    %v500 = vadd.f32 %v430, %v499
    %v501 = vpop.f32.mrb[0].mxu0
    %502 = vdwg.mxu0
    %503 = vmatprep.subr.mxu0 0.0
    %504 = vmatpush1.msra.mxu0 %v133
    %505 = vmatprep.subr.mxu0 0.0
    %506 = vmatpush1.msra.mxu0 %v134
    %507 = vmatprep.subr.mxu0 0.0
    %508 = vmatpush1.msra.mxu0 %v135
    %509 = vmatprep.subr.mxu0 0.0
    %510 = vmatpush1.msra.mxu0 %v136
    %511 = vmatprep.subr.mxu0 0.0
    %512 = vmatpush1.msra.mxu0 %v137
    %513 = vmatprep.subr.mxu0 0.0
    %514 = vmatpush1.msra.mxu0 %v138
    %515 = vmatprep.subr.mxu0 0.0
    %516 = vmatpush1.msra.mxu0 %v139
    %517 = vmatprep.subr.mxu0 0.0
    %518 = vmatpush1.msra.mxu0 %v140
    %519 = vmatprep.subr.mxu0 0.0
    %520 = vmatpush1.msra.mxu0 %v141
    %521 = vmatprep.subr.mxu0 0.0
    %522 = vmatpush1.msra.mxu0 %v142
    %523 = vmatprep.subr.mxu0 0.0
    %524 = vmatpush1.msra.mxu0 %v143
    %525 = vmatprep.subr.mxu0 0.0
    %526 = vmatpush1.msra.mxu0 %v144
    %527 = vmatprep.subr.mxu0 0.0
    %528 = vmatpush1.msra.mxu0 %v145
    %529 = vmatprep.subr.mxu0 0.0
    %530 = vmatpush1.msra.mxu0 %v146
    %531 = vmatprep.subr.mxu0 0.0
    %532 = vmatpush1.msra.mxu0 %v147
    %533 = vmatprep.subr.mxu0 0.0
    %534 = vmatpush1.msra.mxu0 %v148
    %535 = vmatprep.subr.mxu0 0.0
    %536 = vmatpush1.msra.mxu0 %v149
    %537 = vmatprep.subr.mxu0 0.0
    %538 = vmatpush1.msra.mxu0 %v150
    %539 = vmatprep.subr.mxu0 0.0
    %540 = vmatpush1.msra.mxu0 %v151
    %541 = vmatprep.subr.mxu0 0.0
    %542 = vmatpush1.msra.mxu0 %v152
    %543 = vmatprep.subr.mxu0 0.0
    %544 = vmatpush1.msra.mxu0 %v153
    %545 = vmatprep.subr.mxu0 0.0
    %546 = vmatpush1.msra.mxu0 %v154
    %547 = vmatprep.subr.mxu0 0.0
    %548 = vmatpush1.msra.mxu0 %v155
    %549 = vmatprep.subr.mxu0 0.0
    %550 = vmatpush1.msra.mxu0 %v156
    %551 = vmatprep.subr.mxu0 0.0
    %552 = vmatpush1.msra.mxu0 %v157
    %553 = vmatprep.subr.mxu0 0.0
    %554 = vmatpush1.msra.mxu0 %v158
    %555 = vmatprep.subr.mxu0 0.0
    %556 = vmatpush1.msra.mxu0 %v159
    %557 = vmatprep.subr.mxu0 0.0
    %558 = vmatpush1.msra.mxu0 %v160
    %559 = vmatprep.subr.mxu0 0.0
    %560 = vmatpush1.msra.mxu0 %v161
    %561 = vmatprep.subr.mxu0 0.0
    %562 = vmatpush1.msra.mxu0 %v162
    %563 = vmatprep.subr.mxu0 0.0
    %564 = vmatpush1.msra.mxu0 %v163
    %565 = vmatprep.subr.mxu0 0.0
    %566 = vmatpush1.msra.mxu0 %v164
    %567 = vmatprep.mubr.f32.mxu0 %v28
    %568 = vmatmul.mubr.f32.gmra.mrb[0].mxu0 %v27
    %v569 = vpop.f32.mrb[0].mxu0
    %v570 = vadd.f32 %v500, %v569
    %v571 = vpop.f32.mrb[0].mxu0
    %572 = vdwg.mxu0
    %573 = vmatprep.subr.mxu0 0.0
    %574 = vmatpush1.msra.mxu0 %v165
    %575 = vmatprep.subr.mxu0 0.0
    %576 = vmatpush1.msra.mxu0 %v166
    %577 = vmatprep.subr.mxu0 0.0
    %578 = vmatpush1.msra.mxu0 %v167
    %579 = vmatprep.subr.mxu0 0.0
    %580 = vmatpush1.msra.mxu0 %v168
    %581 = vmatprep.subr.mxu0 0.0
    %582 = vmatpush1.msra.mxu0 %v169
    %583 = vmatprep.subr.mxu0 0.0
    %584 = vmatpush1.msra.mxu0 %v170
    %585 = vmatprep.subr.mxu0 0.0
    %586 = vmatpush1.msra.mxu0 %v171
    %587 = vmatprep.subr.mxu0 0.0
    %588 = vmatpush1.msra.mxu0 %v172
    %589 = vmatprep.subr.mxu0 0.0
    %590 = vmatpush1.msra.mxu0 %v173
    %591 = vmatprep.subr.mxu0 0.0
    %592 = vmatpush1.msra.mxu0 %v174
    %593 = vmatprep.subr.mxu0 0.0
    %594 = vmatpush1.msra.mxu0 %v175
    %595 = vmatprep.subr.mxu0 0.0
    %596 = vmatpush1.msra.mxu0 %v176
    %597 = vmatprep.subr.mxu0 0.0
    %598 = vmatpush1.msra.mxu0 %v177
    %599 = vmatprep.subr.mxu0 0.0
    %600 = vmatpush1.msra.mxu0 %v178
    %601 = vmatprep.subr.mxu0 0.0
    %602 = vmatpush1.msra.mxu0 %v179
    %603 = vmatprep.subr.mxu0 0.0
    %604 = vmatpush1.msra.mxu0 %v180
    %605 = vmatprep.subr.mxu0 0.0
    %606 = vmatpush1.msra.mxu0 %v181
    %607 = vmatprep.subr.mxu0 0.0
    %608 = vmatpush1.msra.mxu0 %v182
    %609 = vmatprep.subr.mxu0 0.0
    %610 = vmatpush1.msra.mxu0 %v183
    %611 = vmatprep.subr.mxu0 0.0
    %612 = vmatpush1.msra.mxu0 %v184
    %613 = vmatprep.subr.mxu0 0.0
    %614 = vmatpush1.msra.mxu0 %v185
    %615 = vmatprep.subr.mxu0 0.0
    %616 = vmatpush1.msra.mxu0 %v186
    %617 = vmatprep.subr.mxu0 0.0
    %618 = vmatpush1.msra.mxu0 %v187
    %619 = vmatprep.subr.mxu0 0.0
    %620 = vmatpush1.msra.mxu0 %v188
    %621 = vmatprep.subr.mxu0 0.0
    %622 = vmatpush1.msra.mxu0 %v189
    %623 = vmatprep.subr.mxu0 0.0
    %624 = vmatpush1.msra.mxu0 %v190
    %625 = vmatprep.subr.mxu0 0.0
    %626 = vmatpush1.msra.mxu0 %v191
    %627 = vmatprep.subr.mxu0 0.0
    %628 = vmatpush1.msra.mxu0 %v192
    %629 = vmatprep.subr.mxu0 0.0
    %630 = vmatpush1.msra.mxu0 %v193
    %631 = vmatprep.subr.mxu0 0.0
    %632 = vmatpush1.msra.mxu0 %v194
    %633 = vmatprep.subr.mxu0 0.0
    %634 = vmatpush1.msra.mxu0 %v195
    %635 = vmatprep.subr.mxu0 0.0
    %636 = vmatpush1.msra.mxu0 %v196
    %637 = vmatprep.mubr.f32.mxu0 %v30
    %638 = vmatmul.mubr.f32.gmra.mrb[0].mxu0 %v29
    %v639 = vpop.f32.mrb[0].mxu0
    %v640 = vadd.f32 %v570, %v639
    %v641 = vpop.f32.mrb[0].mxu0
    %642 = vdwg.mxu0
    %643 = vmatprep.subr.mxu0 0.0
    %644 = vmatpush1.msra.mxu0 %v197
    %645 = vmatprep.subr.mxu0 0.0
    %646 = vmatpush1.msra.mxu0 %v198
    %647 = vmatprep.subr.mxu0 0.0
    %648 = vmatpush1.msra.mxu0 %v199
    %649 = vmatprep.subr.mxu0 0.0
    %650 = vmatpush1.msra.mxu0 %v200
    %651 = vmatprep.subr.mxu0 0.0
    %652 = vmatpush1.msra.mxu0 %v201
    %653 = vmatprep.subr.mxu0 0.0
    %654 = vmatpush1.msra.mxu0 %v202
    %655 = vmatprep.subr.mxu0 0.0
    %656 = vmatpush1.msra.mxu0 %v203
    %657 = vmatprep.subr.mxu0 0.0
    %658 = vmatpush1.msra.mxu0 %v204
    %659 = vmatprep.subr.mxu0 0.0
    %660 = vmatpush1.msra.mxu0 %v205
    %661 = vmatprep.subr.mxu0 0.0
    %662 = vmatpush1.msra.mxu0 %v206
    %663 = vmatprep.subr.mxu0 0.0
    %664 = vmatpush1.msra.mxu0 %v207
    %665 = vmatprep.subr.mxu0 0.0
    %666 = vmatpush1.msra.mxu0 %v208
    %667 = vmatprep.subr.mxu0 0.0
    %668 = vmatpush1.msra.mxu0 %v209
    %669 = vmatprep.subr.mxu0 0.0
    %670 = vmatpush1.msra.mxu0 %v210
    %671 = vmatprep.subr.mxu0 0.0
    %672 = vmatpush1.msra.mxu0 %v211
    %673 = vmatprep.subr.mxu0 0.0
    %674 = vmatpush1.msra.mxu0 %v212
    %675 = vmatprep.subr.mxu0 0.0
    %676 = vmatpush1.msra.mxu0 %v213
    %677 = vmatprep.subr.mxu0 0.0
    %678 = vmatpush1.msra.mxu0 %v214
    %679 = vmatprep.subr.mxu0 0.0
    %680 = vmatpush1.msra.mxu0 %v215
    %681 = vmatprep.subr.mxu0 0.0
    %682 = vmatpush1.msra.mxu0 %v216
    %683 = vmatprep.subr.mxu0 0.0
    %684 = vmatpush1.msra.mxu0 %v217
    %685 = vmatprep.subr.mxu0 0.0
    %686 = vmatpush1.msra.mxu0 %v218
    %687 = vmatprep.subr.mxu0 0.0
    %688 = vmatpush1.msra.mxu0 %v219
    %689 = vmatprep.subr.mxu0 0.0
    %690 = vmatpush1.msra.mxu0 %v220
    %691 = vmatprep.subr.mxu0 0.0
    %692 = vmatpush1.msra.mxu0 %v221
    %693 = vmatprep.subr.mxu0 0.0
    %694 = vmatpush1.msra.mxu0 %v222
    %695 = vmatprep.subr.mxu0 0.0
    %696 = vmatpush1.msra.mxu0 %v223
    %697 = vmatprep.subr.mxu0 0.0
    %698 = vmatpush1.msra.mxu0 %v224
    %699 = vmatprep.subr.mxu0 0.0
    %700 = vmatpush1.msra.mxu0 %v225
    %701 = vmatprep.subr.mxu0 0.0
    %702 = vmatpush1.msra.mxu0 %v226
    %703 = vmatprep.subr.mxu0 0.0
    %704 = vmatpush1.msra.mxu0 %v227
    %705 = vmatprep.subr.mxu0 0.0
    %706 = vmatpush1.msra.mxu0 %v228
    %707 = vmatprep.mubr.f32.mxu0 %v32
    %708 = vmatmul.mubr.f32.gmra.mrb[0].mxu0 %v31
    %v709 = vpop.f32.mrb[0].mxu0
    %v710 = vadd.f32 %v640, %v709
    %v711 = vpop.f32.mrb[0].mxu0
    %712 = vdwg.mxu0
    %713 = vmatprep.subr.mxu0 0.0
    %714 = vmatpush1.msra.mxu0 %v229
    %715 = vmatprep.subr.mxu0 0.0
    %716 = vmatpush1.msra.mxu0 %v230
    %717 = vmatprep.subr.mxu0 0.0
    %718 = vmatpush1.msra.mxu0 %v231
    %719 = vmatprep.subr.mxu0 0.0
    %720 = vmatpush1.msra.mxu0 %v232
    %721 = vmatprep.subr.mxu0 0.0
    %722 = vmatpush1.msra.mxu0 %v233
    %723 = vmatprep.subr.mxu0 0.0
    %724 = vmatpush1.msra.mxu0 %v234
    %725 = vmatprep.subr.mxu0 0.0
    %726 = vmatpush1.msra.mxu0 %v235
    %727 = vmatprep.subr.mxu0 0.0
    %728 = vmatpush1.msra.mxu0 %v236
    %729 = vmatprep.subr.mxu0 0.0
    %730 = vmatpush1.msra.mxu0 %v237
    %731 = vmatprep.subr.mxu0 0.0
    %732 = vmatpush1.msra.mxu0 %v238
    %733 = vmatprep.subr.mxu0 0.0
    %734 = vmatpush1.msra.mxu0 %v239
    %735 = vmatprep.subr.mxu0 0.0
    %736 = vmatpush1.msra.mxu0 %v240
    %737 = vmatprep.subr.mxu0 0.0
    %738 = vmatpush1.msra.mxu0 %v241
    %739 = vmatprep.subr.mxu0 0.0
    %740 = vmatpush1.msra.mxu0 %v242
    %741 = vmatprep.subr.mxu0 0.0
    %742 = vmatpush1.msra.mxu0 %v243
    %743 = vmatprep.subr.mxu0 0.0
    %744 = vmatpush1.msra.mxu0 %v244
    %745 = vmatprep.subr.mxu0 0.0
    %746 = vmatpush1.msra.mxu0 %v245
    %747 = vmatprep.subr.mxu0 0.0
    %748 = vmatpush1.msra.mxu0 %v246
    %749 = vmatprep.subr.mxu0 0.0
    %750 = vmatpush1.msra.mxu0 %v247
    %751 = vmatprep.subr.mxu0 0.0
    %752 = vmatpush1.msra.mxu0 %v248
    %753 = vmatprep.subr.mxu0 0.0
    %754 = vmatpush1.msra.mxu0 %v249
    %755 = vmatprep.subr.mxu0 0.0
    %756 = vmatpush1.msra.mxu0 %v250
    %757 = vmatprep.subr.mxu0 0.0
    %758 = vmatpush1.msra.mxu0 %v251
    %759 = vmatprep.subr.mxu0 0.0
    %760 = vmatpush1.msra.mxu0 %v252
    %761 = vmatprep.subr.mxu0 0.0
    %762 = vmatpush1.msra.mxu0 %v253
    %763 = vmatprep.subr.mxu0 0.0
    %764 = vmatpush1.msra.mxu0 %v254
    %765 = vmatprep.subr.mxu0 0.0
    %766 = vmatpush1.msra.mxu0 %v255
    %767 = vmatprep.subr.mxu0 0.0
    %768 = vmatpush1.msra.mxu0 %v256
    %769 = vmatprep.subr.mxu0 0.0
    %770 = vmatpush1.msra.mxu0 %v257
    %771 = vmatprep.subr.mxu0 0.0
    %772 = vmatpush1.msra.mxu0 %v258
    %773 = vmatprep.subr.mxu0 0.0
    %774 = vmatpush1.msra.mxu0 %v259
    %775 = vmatprep.subr.mxu0 0.0
    %776 = vmatpush1.msra.mxu0 %v260
    %777 = vmatprep.mubr.f32.mxu0 %v34
    %778 = vmatmul.mubr.f32.gmra.mrb[0].mxu0 %v33
    %v779 = vpop.f32.mrb[0].mxu0
    %v780 = vadd.f32 %v710, %v779
    %v781 = vpop.f32.mrb[0].mxu0
    %782 = vdwg.mxu0
    %783 = vmatprep.subr.mxu0 0.0
    %784 = vmatpush1.msra.mxu0 %v261
    %785 = vmatprep.subr.mxu0 0.0
    %786 = vmatpush1.msra.mxu0 %v262
    %787 = vmatprep.subr.mxu0 0.0
    %788 = vmatpush1.msra.mxu0 %v263
    %789 = vmatprep.subr.mxu0 0.0
    %790 = vmatpush1.msra.mxu0 %v264
    %791 = vmatprep.subr.mxu0 0.0
    %792 = vmatpush1.msra.mxu0 %v265
    %793 = vmatprep.subr.mxu0 0.0
    %794 = vmatpush1.msra.mxu0 %v266
    %795 = vmatprep.subr.mxu0 0.0
    %796 = vmatpush1.msra.mxu0 %v267
    %797 = vmatprep.subr.mxu0 0.0
    %798 = vmatpush1.msra.mxu0 %v268
    %799 = vmatprep.subr.mxu0 0.0
    %800 = vmatpush1.msra.mxu0 %v269
    %801 = vmatprep.subr.mxu0 0.0
    %802 = vmatpush1.msra.mxu0 %v270
    %803 = vmatprep.subr.mxu0 0.0
    %804 = vmatpush1.msra.mxu0 %v271
    %805 = vmatprep.subr.mxu0 0.0
    %806 = vmatpush1.msra.mxu0 %v272
    %807 = vmatprep.subr.mxu0 0.0
    %808 = vmatpush1.msra.mxu0 %v273
    %809 = vmatprep.subr.mxu0 0.0
    %810 = vmatpush1.msra.mxu0 %v274
    %811 = vmatprep.subr.mxu0 0.0
    %812 = vmatpush1.msra.mxu0 %v275
    %813 = vmatprep.subr.mxu0 0.0
    %814 = vmatpush1.msra.mxu0 %v276
    %815 = vmatprep.subr.mxu0 0.0
    %816 = vmatpush1.msra.mxu0 %v277
    %817 = vmatprep.subr.mxu0 0.0
    %818 = vmatpush1.msra.mxu0 %v278
    %819 = vmatprep.subr.mxu0 0.0
    %820 = vmatpush1.msra.mxu0 %v279
    %821 = vmatprep.subr.mxu0 0.0
    %822 = vmatpush1.msra.mxu0 %v280
    %823 = vmatprep.subr.mxu0 0.0
    %824 = vmatpush1.msra.mxu0 %v281
    %825 = vmatprep.subr.mxu0 0.0
    %826 = vmatpush1.msra.mxu0 %v282
    %827 = vmatprep.subr.mxu0 0.0
    %828 = vmatpush1.msra.mxu0 %v283
    %829 = vmatprep.subr.mxu0 0.0
    %830 = vmatpush1.msra.mxu0 %v284
    %831 = vmatprep.subr.mxu0 0.0
    %832 = vmatpush1.msra.mxu0 %v285
    %833 = vmatprep.subr.mxu0 0.0
    %834 = vmatpush1.msra.mxu0 %v286
    %835 = vmatprep.subr.mxu0 0.0
    %836 = vmatpush1.msra.mxu0 %v287
    %837 = vmatprep.subr.mxu0 0.0
    %838 = vmatpush1.msra.mxu0 %v288
    %839 = vmatprep.subr.mxu0 0.0
    %840 = vmatpush1.msra.mxu0 %v289
    %841 = vmatprep.subr.mxu0 0.0
    %842 = vmatpush1.msra.mxu0 %v290
    %843 = vmatprep.subr.mxu0 0.0
    %844 = vmatpush1.msra.mxu0 %v291
    %845 = vmatprep.subr.mxu0 0.0
    %846 = vmatpush1.msra.mxu0 %v292
    %847 = vmatprep.mubr.f32.mxu0 %v36
    %848 = vmatmul.mubr.f32.gmra.mrb[0].mxu0 %v35
    %v849 = vpop.f32.mrb[0].mxu0
    %v850 = vadd.f32 %v780, %v849
    %v851 = vpop.f32.mrb[0].mxu0
    %852 = vdwg.mxu0
    %v853 = vld [vmem:[%s2] sm:$0xff]
    %v854 = vld [vmem:[%s2 + $0x8] sm:$0xff]
    %v855 = vld [vmem:[%s3] sm:$0x1]
    %v857 = vlaneseq
    %v858 = vshrl.u32 %v857, 7
    %v859 = vsub.s32 0, %v858
    %v860 = vrot.slane %v855, %v859
    %vm862 = vcmask 130048
    %v864 = vsel %vm862, %v850, 0
    %866 = vmatprep.subr.mxu0 0.0
    %867 = vmatpush1.msra.mxu0 %v853
    %868 = vmatprep.subr.mxu0 0.0
    %869 = vmatpush1.msra.mxu0 %v854
    %870 = vmatprep.subr.mxu0 0.0
    %871 = vmatpush1.msra.mxu0 0.0
    %872 = vmatprep.subr.mxu0 0.0
    %873 = vmatpush1.msra.mxu0 0.0
    %874 = vmatprep.subr.mxu0 0.0
    %875 = vmatpush1.msra.mxu0 0.0
    %876 = vmatprep.subr.mxu0 0.0
    %877 = vmatpush1.msra.mxu0 0.0
    %878 = vmatprep.subr.mxu0 0.0
    %879 = vmatpush1.msra.mxu0 0.0
    %880 = vmatprep.subr.mxu0 0.0
    %881 = vmatpush1.msra.mxu0 0.0
    %882 = vmatprep.subr.mxu0 0.0
    %883 = vmatpush1.msra.mxu0 0.0
    %884 = vmatprep.subr.mxu0 0.0
    %885 = vmatpush1.msra.mxu0 0.0
    %886 = vmatprep.subr.mxu0 0.0
    %887 = vmatpush1.msra.mxu0 0.0
    %888 = vmatprep.subr.mxu0 0.0
    %889 = vmatpush1.msra.mxu0 0.0
    %890 = vmatprep.subr.mxu0 0.0
    %891 = vmatpush1.msra.mxu0 0.0
    %892 = vmatprep.subr.mxu0 0.0
    %893 = vmatpush1.msra.mxu0 0.0
    %894 = vmatprep.subr.mxu0 0.0
    %895 = vmatpush1.msra.mxu0 0.0
    %896 = vmatprep.subr.mxu0 0.0
    %897 = vmatpush1.msra.mxu0 0.0
    %898 = vmatprep.subr.mxu0 0.0
    %899 = vmatpush1.msra.mxu0 0.0
    %900 = vmatprep.subr.mxu0 0.0
    %901 = vmatpush1.msra.mxu0 0.0
    %902 = vmatprep.subr.mxu0 0.0
    %903 = vmatpush1.msra.mxu0 0.0
    %904 = vmatprep.subr.mxu0 0.0
    %905 = vmatpush1.msra.mxu0 0.0
    %906 = vmatprep.subr.mxu0 0.0
    %907 = vmatpush1.msra.mxu0 0.0
    %908 = vmatprep.subr.mxu0 0.0
    %909 = vmatpush1.msra.mxu0 0.0
    %910 = vmatprep.subr.mxu0 0.0
    %911 = vmatpush1.msra.mxu0 0.0
    %912 = vmatprep.subr.mxu0 0.0
    %913 = vmatpush1.msra.mxu0 0.0
    %914 = vmatprep.subr.mxu0 0.0
    %915 = vmatpush1.msra.mxu0 0.0
    %916 = vmatprep.subr.mxu0 0.0
    %917 = vmatpush1.msra.mxu0 0.0
    %918 = vmatprep.subr.mxu0 0.0
    %919 = vmatpush1.msra.mxu0 0.0
    %920 = vmatprep.subr.mxu0 0.0
    %921 = vmatpush1.msra.mxu0 0.0
    %922 = vmatprep.subr.mxu0 0.0
    %923 = vmatpush1.msra.mxu0 0.0
    %924 = vmatprep.subr.mxu0 0.0
    %925 = vmatpush1.msra.mxu0 0.0
    %926 = vmatprep.subr.mxu0 0.0
    %927 = vmatpush1.msra.mxu0 0.0
    %928 = vmatprep.subr.mxu0 0.0
    %929 = vmatpush1.msra.mxu0 0.0
    %930 = vmatprep.mubr.f32.mxu0 0.0
    %931 = vmatmul.mubr.f32.gmra.mrb[0].mxu0 %v864
    %v932 = vpop.f32.mrb[0].mxu0
    %v933 = vadd.f32 %v860, %v932
    %v934 = vpop.f32.mrb[0].mxu0
    %935 = vdwg.mxu0
    %v936 = vmax.f32 %v933, 0.0
    %v937 = vld [vmem:[%s4] sm:$0xff]
    %v938 = vld [vmem:[%s4 + $0x8] sm:$0xff]
    %v939 = vld [vmem:[%s4 + $0x10] sm:$0xff]
    %v940 = vld [vmem:[%s4 + $0x18] sm:$0xff]
    %vm941 = vcmask 261120
    %v943 = vsel %vm941, %v936, 0
    %945 = vmatprep.subr.mxu0 0.0
    %946 = vmatpush1.msra.mxu0 %v937
    %947 = vmatprep.subr.mxu0 0.0
    %948 = vmatpush1.msra.mxu0 %v938
    %949 = vmatprep.subr.mxu0 0.0
    %950 = vmatpush1.msra.mxu0 %v939
    %951 = vmatprep.subr.mxu0 0.0
    %952 = vmatpush1.msra.mxu0 %v940
    %953 = vmatprep.subr.mxu0 0.0
    %954 = vmatpush1.msra.mxu0 0.0
    %955 = vmatprep.subr.mxu0 0.0
    %956 = vmatpush1.msra.mxu0 0.0
    %957 = vmatprep.subr.mxu0 0.0
    %958 = vmatpush1.msra.mxu0 0.0
    %959 = vmatprep.subr.mxu0 0.0
    %960 = vmatpush1.msra.mxu0 0.0
    %961 = vmatprep.subr.mxu0 0.0
    %962 = vmatpush1.msra.mxu0 0.0
    %963 = vmatprep.subr.mxu0 0.0
    %964 = vmatpush1.msra.mxu0 0.0
    %965 = vmatprep.subr.mxu0 0.0
    %966 = vmatpush1.msra.mxu0 0.0
    %967 = vmatprep.subr.mxu0 0.0
    %968 = vmatpush1.msra.mxu0 0.0
    %969 = vmatprep.subr.mxu0 0.0
    %970 = vmatpush1.msra.mxu0 0.0
    %971 = vmatprep.subr.mxu0 0.0
    %972 = vmatpush1.msra.mxu0 0.0
    %973 = vmatprep.subr.mxu0 0.0
    %974 = vmatpush1.msra.mxu0 0.0
    %975 = vmatprep.subr.mxu0 0.0
    %976 = vmatpush1.msra.mxu0 0.0
    %977 = vmatprep.subr.mxu0 0.0
    %978 = vmatpush1.msra.mxu0 0.0
    %979 = vmatprep.subr.mxu0 0.0
    %980 = vmatpush1.msra.mxu0 0.0
    %981 = vmatprep.subr.mxu0 0.0
    %982 = vmatpush1.msra.mxu0 0.0
    %983 = vmatprep.subr.mxu0 0.0
    %984 = vmatpush1.msra.mxu0 0.0
    %985 = vmatprep.subr.mxu0 0.0
    %986 = vmatpush1.msra.mxu0 0.0
    %987 = vmatprep.subr.mxu0 0.0
    %988 = vmatpush1.msra.mxu0 0.0
    %989 = vmatprep.subr.mxu0 0.0
    %990 = vmatpush1.msra.mxu0 0.0
    %991 = vmatprep.subr.mxu0 0.0
    %992 = vmatpush1.msra.mxu0 0.0
    %993 = vmatprep.subr.mxu0 0.0
    %994 = vmatpush1.msra.mxu0 0.0
    %995 = vmatprep.subr.mxu0 0.0
    %996 = vmatpush1.msra.mxu0 0.0
    %997 = vmatprep.subr.mxu0 0.0
    %998 = vmatpush1.msra.mxu0 0.0
    %999 = vmatprep.subr.mxu0 0.0
    %1000 = vmatpush1.msra.mxu0 0.0
    %1001 = vmatprep.subr.mxu0 0.0
    %1002 = vmatpush1.msra.mxu0 0.0
    %1003 = vmatprep.subr.mxu0 0.0
    %1004 = vmatpush1.msra.mxu0 0.0
    %1005 = vmatprep.subr.mxu0 0.0
    %1006 = vmatpush1.msra.mxu0 0.0
    %1007 = vmatprep.subr.mxu0 0.0
    %1008 = vmatpush1.msra.mxu0 0.0
    %1009 = vmatprep.mubr.f32.mxu0 0.0
    %1010 = vmatmul.mubr.f32.gmra.mrb[0].mxu0 %v943
    %v1011 = vpop.f32.mrb[0].mxu0
    %v1012 = vadd.f32 0.0, %v1011
    %v1013 = vpop.f32.mrb[0].mxu0
    %1014 = vdwg.mxu0
    %v1015 = vadd.f32 %v933, %v1012
    %1016 = vst.msk [vmem:[#allocation2] sm:$0xff] %vm941, %v1015
    // Predicated region
    $region22: #{tpu_custom_call.1} parent=1 // pred_check
      _
    $region23: #{tpu_custom_call.1} parent=1 // pred_check_branch
      %1018 = sbr.rel (0) target = $region25
    $region24: #{tpu_custom_call.1} parent=1 // pred_region
      %s1020 = ssub.s32 128, 128
      %1021 = vsyncadd [#allocation3], %s1020
      %s1023 = sshll.u32 [#allocation2], 4
      %s1024 = int_to_ptr.vmem [resolvable:$true] %s1023
      %1026 = dma.vmem_to_hbm [thread:$0]  %s1024, 128, %s5, [#allocation3]
    $region25: #{tpu_custom_call.1} parent=1 // pred_fallthru
      _
    // Predicated region
    $region26: #{tpu_custom_call.1} parent=1 // pred_check
      _
    $region27: #{tpu_custom_call.1} parent=1 // pred_check_branch
      %1028 = sbr.rel (0) target = $region29
    $region28: #{tpu_custom_call.1} parent=1 // pred_region
      %1029 = dma.done [#allocation3], 128
    $region29: #{tpu_custom_call.1} parent=1 // pred_fallthru
      _
    %1030 = vsyncpa [#allocation3], 1

</llo_original>
